<compile_context>
chip_gen: v6e
topology: v6e:2x2x1
jax: 0.10.0
libtpu: 0.0.40
codegen_flags: <defaults>
</compile_context>

<pallas_src>
import jax
import jax.numpy as jnp
from jax.experimental import pallas as pl
from jax.experimental.pallas import tpu as pltpu

_LANE = 128
_TARGET_BLOCK_BYTES = 2 << 20       # ~2 MiB blocks: near HBM roofline everywhere
_SMALL_TOTAL_BYTES = 256 << 10      # below this, a single block is best
_MIN_SPLIT_BLOCK_BYTES = 512 << 10  # keep blocks >= 0.5 MiB when re-splitting to 4


def _aglu_kernel(params_ref, x_ref, o_ref):
    """Elementwise AGLU on one (tile_rows, 128) block.

    params_ref (SMEM, scalar-prefetch): [kappa, 1/lam, log(lam)] as f32.
    """
    kappa = params_ref[0]
    inv_lam = params_ref[1]
    log_lam = params_ref[2]

    x = x_ref[...].astype(jnp.float32)
    z = kappa * x - log_lam

    # Softplus with beta = -1 (PyTorch semantics, threshold = 20):
    #   sp(z) = -log(1 + exp(-z))   for -z <= 20
    #   sp(z) = z                   for -z >  20   (linear regime)
    neg = -z
    safe_neg = jnp.minimum(neg, 20.0)          # guard exp() in discarded branch
    sp = jnp.where(neg > 20.0, z, -jnp.log1p(jnp.exp(safe_neg)))

    o_ref[...] = jnp.exp(sp * inv_lam).astype(o_ref.dtype)


def _round_up(v, m):
    return ((v + m - 1) // m) * m


def _pick_tile_rows(rows, itemsize):
    """Block row count for a (rows, 128) slab.

    ~2 MiB blocks, rows aligned to the dtype's sublane packing, and a balanced
    split into >=2 (preferably 4) blocks when the array would otherwise span
    only 1-3 blocks with substantial work (v7x megacore balance).
    """
    row_bytes = _LANE * itemsize
    row_align = 8 * max(1, 4 // itemsize)      # 8 (f32) / 16 (bf16) / 32 (8-bit)
    max_rows = max(row_align,
                   (_TARGET_BLOCK_BYTES // row_bytes) // row_align * row_align)

    total_bytes = rows * row_bytes
    if total_bytes <= _SMALL_TOTAL_BYTES:
        return rows                            # single block == full array (legal)

    nblocks = -(-rows // max_rows)             # ceil
    if nblocks < 4:
        if total_bytes // 4 >= _MIN_SPLIT_BLOCK_BYTES:
            nblocks = 4                        # 4 even blocks: feed both v7x TCs
        else:
            nblocks = max(nblocks, 2)
    tr = _round_up(-(-rows // nblocks), row_align)
    return min(tr, rows)


def _aglu_params(lambd, kappa):
    lam = jnp.maximum(jnp.asarray(lambd, jnp.float32).reshape(()), 1e-4)
    kap = jnp.asarray(kappa, jnp.float32).reshape(())
    return jnp.stack([kap, 1.0 / lam, jnp.log(lam)])   # (3,) f32


def _aglu_2d(x2d, params, n_elems, itemsize):
    """Run the kernel on a lane-dense (rows, 128) slab."""
    rows, lanes = x2d.shape
    tr = _pick_tile_rows(rows, itemsize)
    grid = (pl.cdiv(rows, tr),)
    return pl.pallas_call(
        _aglu_kernel,
        out_shape=jax.ShapeDtypeStruct((rows, lanes), x2d.dtype),
        grid_spec=pltpu.PrefetchScalarGridSpec(
            num_scalar_prefetch=1,
            grid=grid,
            in_specs=[pl.BlockSpec((tr, lanes), lambda i, p: (i, 0))],
            out_specs=pl.BlockSpec((tr, lanes), lambda i, p: (i, 0)),
        ),
        compiler_params=pltpu.CompilerParams(
            dimension_semantics=("parallel",),
            vmem_limit_bytes=32 * 1024 * 1024,   # explicit: > v5e 16 MiB default,
        ),                                       # within v7x 64 MiB physical
        cost_estimate=pl.CostEstimate(
            flops=8 * n_elems,
            transcendentals=3 * n_elems,
            bytes_accessed=2 * n_elems * itemsize,
        ),
    )(params, x2d)


def _aglu_tail(x, lambd, kappa):
    """Pure-JAX epilogue for a < 128-element ragged tail (same math, same dtype)."""
    lam = jnp.maximum(jnp.asarray(lambd, jnp.float32).reshape(()), 1e-4)
    kap = jnp.asarray(kappa, jnp.float32).reshape(())
    z = kap * x.astype(jnp.float32) - jnp.log(lam)
    neg = -z
    sp = jnp.where(neg > 20.0, z, -jnp.log1p(jnp.exp(jnp.minimum(neg, 20.0))))
    return jnp.exp(sp / lam).astype(x.dtype)


def aglu_forward(x, lambd, kappa):
    """Apply AGLU elementwise. x: any shape/dtype; lambd/kappa: scalar params."""
    orig_shape = x.shape
    orig_dtype = x.dtype
    n = x.size
    if n == 0:
        return x
    itemsize = jnp.dtype(orig_dtype).itemsize
    params = _aglu_params(lambd, kappa)

    if n % _LANE == 0:
        # Common case: lane-dense view exists as a pure (free) reshape; no pad.
        x2d = x.reshape(n // _LANE, _LANE)
        out2d = _aglu_2d(x2d, params, n, itemsize)
        return out2d.reshape(orig_shape)

    # Ragged case: kernel on the 128-aligned prefix, tiny pure-JAX tail epilogue
    # (< 128 elements).  Cheaper than jnp.pad + slice (2 extra full HBM passes).
    flat = x.reshape(-1)
    main = (n // _LANE) * _LANE
    tail = _aglu_tail(flat[main:], lambd, kappa)
    if main == 0:
        out = tail
    else:
        head2d = flat[:main].reshape(main // _LANE, _LANE)
        head = _aglu_2d(head2d, params, main, itemsize).reshape(-1)
        out = jnp.concatenate([head, tail])
    return out.reshape(orig_shape)


def aglu_reference(x, lambd, kappa):
    """Pure-JAX reference matching the PyTorch module (f32 math)."""
    lam = jnp.maximum(jnp.asarray(lambd, jnp.float32).reshape(()), 1e-4)
    kap = jnp.asarray(kappa, jnp.float32).reshape(())
    z = kap * x.astype(jnp.float32) - jnp.log(lam)
    neg = -z
    sp = jnp.where(neg > 20.0, z, -jnp.log1p(jnp.exp(jnp.minimum(neg, 20.0))))
    return jnp.exp(sp / lam)


if __name__ == "__main__":
    key = jax.random.PRNGKey(0)
    kx, kl, kk = jax.random.split(key, 3)

    # Small NCHW input consistent with a conv-activation use-site.
    x = jax.random.normal(kx, (2, 4, 16, 16), dtype=jnp.float32)

    # nn.init.uniform_(torch.empty(1)) -> U[0, 1), shape (1,)
    lambd = jax.random.uniform(kl, (1,), dtype=jnp.float32)
    kappa = jax.random.uniform(kk, (1,), dtype=jnp.float32)

    # f32 path (n % 128 == 0 -> pure-kernel path, no padding).
    out = jax.block_until_ready(aglu_forward(x, lambd, kappa))
    ref = aglu_reference(x, lambd, kappa)
    assert out.shape == x.shape and out.dtype == x.dtype
    assert jnp.allclose(out, ref, rtol=1e-5, atol=1e-5)

    # bf16 I/O path (kernel keeps original dtype end-to-end, f32 math inside).
    x_bf16 = x.astype(jnp.bfloat16)
    out_bf16 = jax.block_until_ready(aglu_forward(x_bf16, lambd, kappa))
    ref_bf16 = aglu_reference(x_bf16, lambd, kappa)
    assert out_bf16.shape == x.shape and out_bf16.dtype == jnp.bfloat16
    assert jnp.allclose(out_bf16.astype(jnp.float32), ref_bf16,
                        rtol=2e-2, atol=2e-2)

    # Ragged-size path (n % 128 != 0): kernel prefix + tiny pure-JAX tail.
    x_rag = jax.random.normal(kx, (3, 129), dtype=jnp.float32)
    out_rag = jax.block_until_ready(aglu_forward(x_rag, lambd, kappa))
    ref_rag = aglu_reference(x_rag, lambd, kappa)
    assert out_rag.shape == x_rag.shape
    assert jnp.allclose(out_rag, ref_rag, rtol=1e-5, atol=1e-5)

    print("KERNEL_OK")
</pallas_src>

<mosaic_0001>
module attributes {stable_mosaic.version = 11 : i64} {
  func.func @_aglu_kernel(%arg0: i32, %arg1: memref<3xf32, #tpu.memory_space<smem>>, %arg2: memref<16x128xf32, #tpu.memory_space<vmem>>, %arg3: memref<16x128xf32, #tpu.memory_space<vmem>>) attributes {dimension_semantics = [#tpu.dimension_semantics<parallel>], iteration_bounds = array<i64: 1>, scalar_prefetch = 1 : i64, scratch_operands = 0 : i64, tpu.core_type = #tpu.core_type<tc>, window_params = [{transform_indices = @transform_0, window_bounds = array<i64: 16, 128>}, {transform_indices = @transform_1, window_bounds = array<i64: 16, 128>}]} {
    %c0 = arith.constant 0 : index
    %0 = memref.load %arg1[%c0] : memref<3xf32, #tpu.memory_space<smem>>
    %c1 = arith.constant 1 : index
    %1 = memref.load %arg1[%c1] : memref<3xf32, #tpu.memory_space<smem>>
    %c2 = arith.constant 2 : index
    %2 = memref.load %arg1[%c2] : memref<3xf32, #tpu.memory_space<smem>>
    %c0_0 = arith.constant 0 : index
    %c0_1 = arith.constant 0 : index
    %3 = vector.load %arg2[%c0_0, %c0_1] : memref<16x128xf32, #tpu.memory_space<vmem>>, vector<16x128xf32>
    %4 = vector.broadcast %0 : f32 to vector<16x128xf32>
    %5 = arith.mulf %4, %3 : vector<16x128xf32>
    %6 = vector.broadcast %2 : f32 to vector<16x128xf32>
    %7 = arith.subf %5, %6 : vector<16x128xf32>
    %cst = arith.constant 0.000000e+00 : f32
    %8 = vector.broadcast %cst : f32 to vector<16x128xf32>
    %9 = arith.subf %8, %7 : vector<16x128xf32>
    %cst_2 = arith.constant 2.000000e+01 : f32
    %10 = vector.broadcast %cst_2 : f32 to vector<16x128xf32>
    %11 = arith.minimumf %9, %10 : vector<16x128xf32>
    %cst_3 = arith.constant 2.000000e+01 : f32
    %12 = vector.broadcast %cst_3 : f32 to vector<16x128xf32>
    %13 = arith.cmpf ogt, %9, %12 : vector<16x128xf32>
    %14 = math.exp %11 : vector<16x128xf32>
    %15 = math.log1p %14 : vector<16x128xf32>
    %cst_4 = arith.constant 0.000000e+00 : f32
    %16 = vector.broadcast %cst_4 : f32 to vector<16x128xf32>
    %17 = arith.subf %16, %15 : vector<16x128xf32>
    %18 = arith.select %13, %7, %17 : vector<16x128xi1>, vector<16x128xf32>
    %19 = vector.broadcast %1 : f32 to vector<16x128xf32>
    %20 = arith.mulf %18, %19 : vector<16x128xf32>
    %21 = math.exp %20 : vector<16x128xf32>
    %c0_5 = arith.constant 0 : index
    %c0_6 = arith.constant 0 : index
    %22 = vector.load %arg3[%c0_5, %c0_6] : memref<16x128xf32, #tpu.memory_space<vmem>>, vector<16x128xf32>
    tpu.vector_store %arg3[%c0_5, %c0_6], %21 {strides = array<i32>} : memref<16x128xf32, #tpu.memory_space<vmem>>, vector<16x128xf32>,
    return
  }
  func.func @transform_0(%arg0: i32, %arg1: memref<3xf32, #tpu.memory_space<smem>>) -> (i32, i32) {
    %c0_i32 = arith.constant 0 : i32
    %c0_i32_0 = arith.constant 0 : i32
    return %arg0, %c0_i32 : i32, i32
  }
  func.func @transform_1(%arg0: i32, %arg1: memref<3xf32, #tpu.memory_space<smem>>) -> (i32, i32) {
    %c0_i32 = arith.constant 0 : i32
    %c0_i32_0 = arith.constant 0 : i32
    return %arg0, %c0_i32 : i32, i32
  }
}

</mosaic_0001>

<llo_original>
// kernel: tpu_custom_call.1
$region0: #{tpu_custom_call.1}
  #allocation0 [shape = 'u32[]', space=smem, size = 0x4, offset = 0x4, fixed_abs, tag = 'smem constant byte address 0x4 - core index']
  #allocation1 [shape = 'u32[144,128]{1,0:T(1,128)}', space=vmem, size = 0x12000, scoped, tag = 'internal scratch']
  #allocation2 [shape = 's32[1]{0}', space=sflag, size = 0x4, scoped, tag = 'scoped memory for tpu_custom_call.1']
  #allocation3 [shape = 'u8[512]{0}', space=smem, size = 0x200, scoped, tag = 'prefetched SMEM operand 0']
  %s0 = inlined_call_operand.hbm [shape: f32[3], index: 0, kind: input, shape index: {}]
  %s1 = inlined_call_operand.hbm [shape: f32[16,128], index: 1, kind: input, shape index: {}]
  %s2 = inlined_call_operand.hbm [shape: f32[16,128], index: 2, kind: output, shape index: {}]
  %s3 = sld [smem:[#allocation0]]
  $region18: #{tpu_custom_call.1} parent=0
    _
  %s5 = ssub.s32 1, %s3
  %s6 = scalar_select 0, %s5, %s3
  %8 = dma.hbm_to_smem %s0, 16, [#allocation3], [#allocation2]
  %9 = dma.done [#allocation2], 16
  %10 = sfence
  $region1: #{tpu_custom_call.1} parent=0
    #allocation4 [shape = 'u8[8192]{0}', space=vmem, size = 0x2000, scoped, tag = 'input window, operand 1, single buffered']
    #allocation5 [shape = 's32[1]{0}', space=sflag, size = 0x4, scoped, tag = 'scoped memory for tpu_custom_call.1']
    #allocation6 [shape = 's32[1]{0}', space=sflag, size = 0x4, scoped, tag = 'scoped memory for tpu_custom_call.1']
    #allocation7 [shape = 'u8[8192]{0}', space=vmem, size = 0x2000, scoped, tag = 'output window, operand 0, single buffered']
    %11 = vsyncpa [#allocation5], 0
    %12 = vsyncpa [#allocation6], 0
    // Predicated region
    $region2: #{tpu_custom_call.1} parent=1 // pred_check
      _
    $region3: #{tpu_custom_call.1} parent=1 // pred_check_branch
      %14 = sbr.rel (0) target = $region5
    $region4: #{tpu_custom_call.1} parent=1 // pred_region
      %s16 = ssub.s32 256, 256
      %17 = vsyncadd [#allocation5], %s16
      %s18 = sshll.u32 [#allocation4], 4
      %s19 = int_to_ptr.vmem [resolvable:$true] %s18
      %24 = dma.hbm_to_vmem [thread:$0]  %s1, 256, %s19, [#allocation5], 128, 128, 8
    $region5: #{tpu_custom_call.1} parent=1 // pred_fallthru
      _
    // Predicated region
    $region6: #{tpu_custom_call.1} parent=1 // pred_check
      _
    $region7: #{tpu_custom_call.1} parent=1 // pred_check_branch
      %26 = sbr.rel (0) target = $region9
    $region8: #{tpu_custom_call.1} parent=1 // pred_region
      %27 = dma.done [#allocation5], 256
    $region9: #{tpu_custom_call.1} parent=1 // pred_fallthru
      _
    %s28 = sld [smem:[#allocation3]]
    %s29 = sld [smem:[#allocation3 + $0x1]]
    %s30 = sld [smem:[#allocation3 + $0x2]]
    %v31 = vld [vmem:[#allocation4] sm:$0xff]
    %v32 = vld [vmem:[#allocation4 + $0x8] sm:$0xff]
    %v33 = vstv %s28
    %v34 = vmul.f32 %v33, %v31
    %v35 = vmul.f32 %v33, %v32
    %v36 = vstv %s30
    %v37 = vsub.f32 %v34, %v36
    %v38 = vsub.f32 %v35, %v36
    %v39 = vsub.f32 0.0, %v37
    %v40 = vsub.f32 0.0, %v38
    %v41 = vmin.f32 %v39, 20.0
    %v42 = vmin.f32 %v40, 20.0
    %vm43 = vcmp.gt.f32.partialorder %v39, 20.0
    %vm44 = vcmp.gt.f32.partialorder %v40, 20.0
    %v45 = vmul.f32 %v41, 1.442695
    %v46 = vpow.pop %v45
    %v47 = vmul.f32 %v42, 1.442695
    %v48 = vpow.pop %v47
    %v49 = vadd.f32 %v46, 1.0
    %v50 = vlog2.pop %v49
    %v51 = vmul.f32 %v50, 0.6931472
    %v52 = vmul.f32 -0.5, %v46
    %v53 = vadd.f32 %v52, 1.0
    %v54 = vmul.f32 %v53, %v46
    %v55 = vand.u32 2147483647, %v46
    %vm56 = vcmp.lt.f32.partialorder %v55, 0.0004427343
    %v57 = vsel %vm56, %v54, %v51
    %v58 = vadd.f32 %v48, 1.0
    %v59 = vlog2.pop %v58
    %v60 = vmul.f32 %v59, 0.6931472
    %v61 = vmul.f32 -0.5, %v48
    %v62 = vadd.f32 %v61, 1.0
    %v63 = vmul.f32 %v62, %v48
    %v64 = vand.u32 2147483647, %v48
    %vm65 = vcmp.lt.f32.partialorder %v64, 0.0004427343
    %v66 = vsel %vm65, %v63, %v60
    %v67 = vsub.f32 0.0, %v57
    %v68 = vsub.f32 0.0, %v66
    %v69 = vsel %vm43, %v37, %v67
    %v70 = vsel %vm44, %v38, %v68
    %v71 = vstv %s29
    %v72 = vmul.f32 %v69, %v71
    %v73 = vmul.f32 %v70, %v71
    %v74 = vmul.f32 %v72, 1.442695
    %v75 = vpow.pop %v74
    %v76 = vmul.f32 %v73, 1.442695
    %v77 = vpow.pop %v76
    %78 = vst [vmem:[#allocation7] sm:$0xff] %v75
    %79 = vst [vmem:[#allocation7 + $0x8] sm:$0xff] %v77
    // Predicated region
    $region10: #{tpu_custom_call.1} parent=1 // pred_check
      _
    $region11: #{tpu_custom_call.1} parent=1 // pred_check_branch
      %81 = sbr.rel (0) target = $region13
    $region12: #{tpu_custom_call.1} parent=1 // pred_region
      %s83 = ssub.s32 256, 256
      %84 = vsyncadd [#allocation6], %s83
      %s85 = sshll.u32 [#allocation7], 4
      %s86 = int_to_ptr.vmem [resolvable:$true] %s85
      %91 = dma.vmem_to_hbm [thread:$0]  %s86, 256, %s2, [#allocation6], 128, 128, 8
    $region13: #{tpu_custom_call.1} parent=1 // pred_fallthru
      _
    // Predicated region
    $region14: #{tpu_custom_call.1} parent=1 // pred_check
      _
    $region15: #{tpu_custom_call.1} parent=1 // pred_check_branch
      %93 = sbr.rel (0) target = $region17
    $region16: #{tpu_custom_call.1} parent=1 // pred_region
      %94 = dma.done [#allocation6], 256
    $region17: #{tpu_custom_call.1} parent=1 // pred_fallthru
      _
    %95 = vsyncpa [#allocation5], 1
    %96 = vsyncpa [#allocation6], 1

</llo_original>
